<compile_context>
chip_gen: v7x
topology: tpu7x:2x2x1
jax: 0.10.0
libtpu: 0.0.40
codegen_flags: <defaults>
</compile_context>

<pallas_src>
import jax
import jax.numpy as jnp
from jax.experimental import pallas as pl
from jax.experimental.pallas import tpu as pltpu


def _mlp_tail(h1, b1_ref, w2_ref, b2_ref, w3_ref, b3_ref, q_ref):
    """relu(fc1) -> fc2 -> relu -> fc3, with fc3 as a VPU/XLU lane reduce."""
    h1 = jnp.maximum(h1 + b1_ref[...], 0.0)                              # relu, f32
    h2 = jnp.dot(h1, w2_ref[...], preferred_element_type=jnp.float32)    # fc2
    h2 = jnp.maximum(h2 + b2_ref[...], 0.0)                              # relu, f32
    # fc3 (H -> 1) as broadcast-mul + lane reduce; feeds the lane-dense
    # (1, tb//128, 128) output tile instead of a width-1 masked-store column.
    q = jnp.sum(h2 * w3_ref[...], axis=-1) + b3_ref[0, 0]                # (tb,)
    q_ref[...] = q.reshape(q_ref.shape).astype(q_ref.dtype)


def maddpg_critic_kernel_split(xs_ref, xa_ref, w1s_ref, w1a_ref, b1_ref,
                               w2_ref, b2_ref, w3_ref, b3_ref, q_ref):
    # fc1 with torch.cat([state, actions]) fused as two split matmuls (no
    # concatenated activation ever hits HBM).  f32 accumulation on the MXU.
    h1 = jnp.dot(xs_ref[...], w1s_ref[...], preferred_element_type=jnp.float32)
    h1 = h1 + jnp.dot(xa_ref[...], w1a_ref[...], preferred_element_type=jnp.float32)
    _mlp_tail(h1, b1_ref, w2_ref, b2_ref, w3_ref, b3_ref, q_ref)


def maddpg_critic_kernel_single(x_ref, w1_ref, b1_ref, w2_ref, b2_ref,
                                w3_ref, b3_ref, q_ref):
    # actions is None: fc1 on the already-concatenated input, no wrapper slices.
    h1 = jnp.dot(x_ref[...], w1_ref[...], preferred_element_type=jnp.float32)
    _mlp_tail(h1, b1_ref, w2_ref, b2_ref, w3_ref, b3_ref, q_ref)


def _round_up(x, m):
    return ((x + m - 1) // m) * m


def _pick_batch_tile(B, tb):
    """Pick a batch-row tile (multiple of 128)."""
    if tb is None:
        tb = 8192            # amortizes the ~0.35 us fixed per-grid-step cost
    tb = max(128, min(_round_up(tb, 128), _round_up(B, 128)))
    # Prefer >= 2 grid steps for large batches so both v7x TensorCores get work.
    if B > 1024 and pl.cdiv(B, tb) < 2:
        tb = _round_up(pl.cdiv(B, 2), 128)
    # Re-balance so the ragged last tile isn't mostly wasted rows.
    num_tiles = pl.cdiv(B, tb)
    tb = _round_up(pl.cdiv(B, num_tiles), 128)
    return tb


def maddpg_critic_forward(inputs, actions, params, hidden_state=None, *,
                          tb=None, vmem_limit_bytes=48 * 1024 * 1024):
    """inputs: [..., state_dim]; actions: [..., n_actions * n_agents] or None.

    Returns (q, hidden_state) with q shaped [B, 1], B = prod(leading dims),
    mirroring the PyTorch .view(-1, ...) semantics.
    """
    w1, b1, w2, b2, w3, b3 = params
    d_in, H = w1.shape
    b1 = b1.reshape(1, H)
    b2 = b2.reshape(1, H)
    w3_row = w3.reshape(1, H)
    b3 = b3.reshape(1, 1)

    if actions is not None:
        x_a = actions.reshape(-1, actions.shape[-1])
        ad = x_a.shape[-1]
        sd = d_in - ad
        assert 0 < sd < d_in, (
            f"actions last dim {ad} inconsistent with fc1 input size {d_in}")
        x_s = inputs.reshape(-1, sd)
        assert x_s.shape[0] == x_a.shape[0]
        B = x_s.shape[0]
        kernel = maddpg_critic_kernel_split
        x_args = (x_s, x_a)
        w1_args = (w1[:sd], w1[sd:])     # split fc1 weight matches fused concat
    else:
        x = inputs.reshape(-1, d_in)
        B = x.shape[0]
        kernel = maddpg_critic_kernel_single
        x_args = (x,)
        w1_args = (w1,)

    if B == 0:
        return jnp.zeros((0, 1), jnp.float32), hidden_state

    tb = _pick_batch_tile(B, tb)
    num_tiles = pl.cdiv(B, tb)
    rows = tb // 128                     # lane-dense output: (1, rows, 128) per tile

    in_specs = (
        [pl.BlockSpec((tb, xi.shape[-1]), lambda i: (i, 0)) for xi in x_args]
        + [pl.BlockSpec((wi.shape[0], H), lambda i: (0, 0)) for wi in w1_args]
        + [pl.BlockSpec((1, H), lambda i: (0, 0)),                       # b1
           pl.BlockSpec((H, H), lambda i: (0, 0)),                       # W2
           pl.BlockSpec((1, H), lambda i: (0, 0)),                       # b2
           pl.BlockSpec((1, H), lambda i: (0, 0)),                       # W3 row
           pl.BlockSpec(memory_space=pltpu.MemorySpace.SMEM)]            # b3 scalar
    )
    args = (*x_args, *w1_args, b1, w2, b2, w3_row, b3)

    flops = 2 * num_tiles * tb * (d_in * H + H * H + H)
    bytes_accessed = sum(int(a.size) * a.dtype.itemsize for a in args) + B * 4
    cost = pl.CostEstimate(flops=int(flops), transcendentals=0,
                           bytes_accessed=int(bytes_accessed))

    q3d = pl.pallas_call(
        kernel,
        out_shape=jax.ShapeDtypeStruct((num_tiles, rows, 128), jnp.float32),
        grid_spec=pltpu.PrefetchScalarGridSpec(
            num_scalar_prefetch=0,
            grid=(num_tiles,),
            in_specs=in_specs,
            out_specs=pl.BlockSpec((1, rows, 128), lambda i: (i, 0, 0)),
        ),
        compiler_params=pltpu.CompilerParams(
            dimension_semantics=("parallel",),   # shards tiles across TCs (v7x)
            vmem_limit_bytes=int(vmem_limit_bytes)),
        cost_estimate=cost,
    )(*args)

    # Lane-dense (num_tiles, rows, 128) -> flat rows -> (B, 1); drop ragged rows.
    q = q3d.reshape(-1)[:B].reshape(B, 1)
    return q, hidden_state


def init_params(key, input_shape, hidden_dim):
    """nn.Linear-style U(-1/sqrt(fan_in), 1/sqrt(fan_in)); weights stored [in, out]."""
    def linear(k, fan_in, fan_out):
        kw, kb = jax.random.split(k)
        bound = 1.0 / jnp.sqrt(fan_in)
        w = jax.random.uniform(kw, (fan_in, fan_out), jnp.float32, -bound, bound)
        b = jax.random.uniform(kb, (1, fan_out), jnp.float32, -bound, bound)
        return w, b

    k1, k2, k3 = jax.random.split(key, 3)
    w1, b1 = linear(k1, input_shape, hidden_dim)
    w2, b2 = linear(k2, hidden_dim, hidden_dim)
    w3, b3 = linear(k3, hidden_dim, 1)
    return (w1, b1, w2, b2, w3, b3)


def reference_forward(inputs, actions, params):
    w1, b1, w2, b2, w3, b3 = params
    if actions is not None:
        act = actions.reshape(-1, actions.shape[-1])
        state_dim = w1.shape[0] - act.shape[-1]
        x = jnp.concatenate([inputs.reshape(-1, state_dim), act], axis=-1)
    else:
        x = inputs.reshape(-1, w1.shape[0])
    h1 = jnp.maximum(x @ w1 + b1, 0.0)
    h2 = jnp.maximum(h1 @ w2 + b2, 0.0)
    return h2 @ w3 + b3.reshape(1, 1)


if __name__ == "__main__":
    # Small synthetic problem consistent with the module:
    #   scheme['state']['vshape'] = 48, n_agents = 3, n_actions = 4
    #   input_shape = 48 + 3*4 = 60, rnn_hidden_dim = 32
    state_dim = 48
    n_agents = 3
    n_actions = 4
    hidden_dim = 32
    input_shape = state_dim + n_agents * n_actions

    key = jax.random.PRNGKey(0)
    kp, ki, ka, ki2, ka2 = jax.random.split(key, 5)
    params = init_params(kp, input_shape, hidden_dim)

    # --- test 1: tiny batch (single ragged tile), actions given -------------
    batch, seq = 2, 4                                   # B = 2*4*3 = 24 rows
    inputs = jax.random.normal(ki, (batch, seq, n_agents, state_dim), jnp.float32)
    actions = jax.random.normal(
        ka, (batch, seq, n_agents, n_agents * n_actions), jnp.float32)
    q, hidden = maddpg_critic_forward(inputs, actions, params)
    q = jax.block_until_ready(q)
    q_ref = reference_forward(inputs, actions, params)
    assert q.shape == (batch * seq * n_agents, 1), q.shape
    assert hidden is None
    assert jnp.allclose(q, q_ref, atol=1e-4, rtol=1e-4), (
        float(jnp.max(jnp.abs(q - q_ref))))

    # --- test 2: multi-tile grid with a ragged last block -------------------
    batch2, seq2 = 2, 50                                # B = 300 rows, tb=128 -> 3 tiles
    inputs2 = jax.random.normal(ki2, (batch2, seq2, n_agents, state_dim), jnp.float32)
    actions2 = jax.random.normal(
        ka2, (batch2, seq2, n_agents, n_agents * n_actions), jnp.float32)
    q2, _ = maddpg_critic_forward(inputs2, actions2, params, tb=128)
    q2 = jax.block_until_ready(q2)
    q2_ref = reference_forward(inputs2, actions2, params)
    assert q2.shape == (batch2 * seq2 * n_agents, 1), q2.shape
    assert jnp.allclose(q2, q2_ref, atol=1e-4, rtol=1e-4), (
        float(jnp.max(jnp.abs(q2 - q2_ref))))

    # --- test 3: actions=None path (pre-concatenated inputs, single kernel) -
    x_full = jnp.concatenate(
        [inputs.reshape(-1, state_dim),
         actions.reshape(-1, n_agents * n_actions)], axis=-1)
    q3, _ = maddpg_critic_forward(x_full, None, params)
    q3 = jax.block_until_ready(q3)
    q3_ref = reference_forward(x_full, None, params)
    assert q3.shape == (batch * seq * n_agents, 1), q3.shape
    assert jnp.allclose(q3, q3_ref, atol=1e-4, rtol=1e-4), (
        float(jnp.max(jnp.abs(q3 - q3_ref))))

    print("KERNEL_OK")
</pallas_src>

<mosaic_0001>
module attributes {stable_mosaic.version = 11 : i64} {
  func.func @maddpg_critic_kernel_split(%arg0: i32, %arg1: memref<128x48xf32, #tpu.memory_space<vmem>>, %arg2: memref<128x12xf32, #tpu.memory_space<vmem>>, %arg3: memref<48x32xf32, #tpu.memory_space<vmem>>, %arg4: memref<12x32xf32, #tpu.memory_space<vmem>>, %arg5: memref<1x32xf32, #tpu.memory_space<vmem>>, %arg6: memref<32x32xf32, #tpu.memory_space<vmem>>, %arg7: memref<1x32xf32, #tpu.memory_space<vmem>>, %arg8: memref<1x32xf32, #tpu.memory_space<vmem>>, %arg9: memref<1x1xf32, #tpu.memory_space<smem>>, %arg10: memref<1x1x128xf32, #tpu.memory_space<vmem>>) attributes {dimension_semantics = [#tpu.dimension_semantics<parallel>], iteration_bounds = array<i64: 1>, scalar_prefetch = 0 : i64, scratch_operands = 0 : i64, tpu.core_type = #tpu.core_type<tc>, window_params = [{transform_indices = @transform_0, window_bounds = array<i64: 128, 48>}, {transform_indices = @transform_1, window_bounds = array<i64: 128, 12>}, {pipeline_mode = #tpu.pipeline_mode<synchronous>, transform_indices = @transform_2, window_bounds = array<i64: 48, 32>}, {pipeline_mode = #tpu.pipeline_mode<synchronous>, transform_indices = @transform_3, window_bounds = array<i64: 12, 32>}, {pipeline_mode = #tpu.pipeline_mode<synchronous>, transform_indices = @transform_4, window_bounds = array<i64: 1, 32>}, {pipeline_mode = #tpu.pipeline_mode<synchronous>, transform_indices = @transform_5, window_bounds = array<i64: 32, 32>}, {pipeline_mode = #tpu.pipeline_mode<synchronous>, transform_indices = @transform_6, window_bounds = array<i64: 1, 32>}, {pipeline_mode = #tpu.pipeline_mode<synchronous>, transform_indices = @transform_7, window_bounds = array<i64: 1, 32>}, {transform_indices = @transform_8, window_bounds = array<i64: 1, 1>}, {transform_indices = @transform_9, window_bounds = array<i64: 1, 1, 128>}]} {
    %c0 = arith.constant 0 : index
    %c0_0 = arith.constant 0 : index
    %0 = vector.load %arg1[%c0, %c0_0] : memref<128x48xf32, #tpu.memory_space<vmem>>, vector<128x48xf32>
    %c0_1 = arith.constant 0 : index
    %c0_2 = arith.constant 0 : index
    %1 = vector.load %arg3[%c0_1, %c0_2] : memref<48x32xf32, #tpu.memory_space<vmem>>, vector<48x32xf32>
    %cst = arith.constant dense<0.000000e+00> : vector<128x32xf32>
    %2 = tpu.matmul %0, %1, %cst {dimension_numbers = #tpu.dot_dimension_numbers<[1], [0], [0], [1], [0, 0, 1, 1], [], []>} : vector<128x48xf32>, vector<48x32xf32>, vector<128x32xf32> -> vector<128x32xf32>
    %c0_3 = arith.constant 0 : index
    %c0_4 = arith.constant 0 : index
    %3 = vector.load %arg2[%c0_3, %c0_4] : memref<128x12xf32, #tpu.memory_space<vmem>>, vector<128x12xf32>
    %c0_5 = arith.constant 0 : index
    %c0_6 = arith.constant 0 : index
    %4 = vector.load %arg4[%c0_5, %c0_6] : memref<12x32xf32, #tpu.memory_space<vmem>>, vector<12x32xf32>
    %cst_7 = arith.constant dense<0.000000e+00> : vector<128x32xf32>
    %5 = tpu.matmul %3, %4, %cst_7 {dimension_numbers = #tpu.dot_dimension_numbers<[1], [0], [0], [1], [0, 0, 1, 1], [], []>} : vector<128x12xf32>, vector<12x32xf32>, vector<128x32xf32> -> vector<128x32xf32>
    %6 = arith.addf %2, %5 : vector<128x32xf32>
    %c0_8 = arith.constant 0 : index
    %c0_9 = arith.constant 0 : index
    %7 = vector.load %arg5[%c0_8, %c0_9] : memref<1x32xf32, #tpu.memory_space<vmem>>, vector<1x32xf32>
    %8 = vector.broadcast %7 : vector<1x32xf32> to vector<128x32xf32>
    %9 = arith.addf %6, %8 : vector<128x32xf32>
    %cst_10 = arith.constant 0.000000e+00 : f32
    %10 = vector.broadcast %cst_10 : f32 to vector<128x32xf32>
    %11 = arith.maximumf %9, %10 : vector<128x32xf32>
    %c0_11 = arith.constant 0 : index
    %c0_12 = arith.constant 0 : index
    %12 = vector.load %arg6[%c0_11, %c0_12] : memref<32x32xf32, #tpu.memory_space<vmem>>, vector<32x32xf32>
    %cst_13 = arith.constant dense<0.000000e+00> : vector<128x32xf32>
    %13 = tpu.matmul %11, %12, %cst_13 {dimension_numbers = #tpu.dot_dimension_numbers<[1], [0], [0], [1], [0, 0, 1, 1], [], []>} : vector<128x32xf32>, vector<32x32xf32>, vector<128x32xf32> -> vector<128x32xf32>
    %c0_14 = arith.constant 0 : index
    %c0_15 = arith.constant 0 : index
    %14 = vector.load %arg7[%c0_14, %c0_15] : memref<1x32xf32, #tpu.memory_space<vmem>>, vector<1x32xf32>
    %15 = vector.broadcast %14 : vector<1x32xf32> to vector<128x32xf32>
    %16 = arith.addf %13, %15 : vector<128x32xf32>
    %cst_16 = arith.constant 0.000000e+00 : f32
    %17 = vector.broadcast %cst_16 : f32 to vector<128x32xf32>
    %18 = arith.maximumf %16, %17 : vector<128x32xf32>
    %c0_17 = arith.constant 0 : index
    %c0_18 = arith.constant 0 : index
    %19 = vector.load %arg8[%c0_17, %c0_18] : memref<1x32xf32, #tpu.memory_space<vmem>>, vector<1x32xf32>
    %20 = vector.broadcast %19 : vector<1x32xf32> to vector<128x32xf32>
    %21 = arith.mulf %18, %20 : vector<128x32xf32>
    %cst_19 = arith.constant dense<0.000000e+00> : vector<128xf32>
    %22 = vector.multi_reduction <add>, %21, %cst_19 [1] : vector<128x32xf32> to vector<128xf32>
    %c0_20 = arith.constant 0 : index
    %c0_21 = arith.constant 0 : index
    %23 = memref.load %arg9[%c0_20, %c0_21] : memref<1x1xf32, #tpu.memory_space<smem>>
    %24 = vector.broadcast %23 : f32 to vector<128xf32>
    %25 = arith.addf %22, %24 : vector<128xf32>
    %26 = vector.shape_cast %25 : vector<128xf32> to vector<1x1x128xf32>
    %c0_22 = arith.constant 0 : index
    %c0_23 = arith.constant 0 : index
    %c0_24 = arith.constant 0 : index
    %27 = vector.load %arg10[%c0_22, %c0_23, %c0_24] : memref<1x1x128xf32, #tpu.memory_space<vmem>>, vector<1x1x128xf32>
    tpu.vector_store %arg10[%c0_22, %c0_23, %c0_24], %26 {strides = array<i32>} : memref<1x1x128xf32, #tpu.memory_space<vmem>>, vector<1x1x128xf32>,
    return
  }
  func.func @transform_0(%arg0: i32) -> (i32, i32) {
    %c0_i32 = arith.constant 0 : i32
    %c0_i32_0 = arith.constant 0 : i32
    return %arg0, %c0_i32 : i32, i32
  }
  func.func @transform_1(%arg0: i32) -> (i32, i32) {
    %c0_i32 = arith.constant 0 : i32
    %c0_i32_0 = arith.constant 0 : i32
    return %arg0, %c0_i32 : i32, i32
  }
  func.func @transform_2(%arg0: i32) -> (i32, i32) {
    %c0_i32 = arith.constant 0 : i32
    %c0_i32_0 = arith.constant 0 : i32
    %c0_i32_1 = arith.constant 0 : i32
    return %c0_i32, %c0_i32_0 : i32, i32
  }
  func.func @transform_3(%arg0: i32) -> (i32, i32) {
    %c0_i32 = arith.constant 0 : i32
    %c0_i32_0 = arith.constant 0 : i32
    %c0_i32_1 = arith.constant 0 : i32
    return %c0_i32, %c0_i32_0 : i32, i32
  }
  func.func @transform_4(%arg0: i32) -> (i32, i32) {
    %c0_i32 = arith.constant 0 : i32
    %c0_i32_0 = arith.constant 0 : i32
    %c0_i32_1 = arith.constant 0 : i32
    return %c0_i32, %c0_i32_0 : i32, i32
  }
  func.func @transform_5(%arg0: i32) -> (i32, i32) {
    %c0_i32 = arith.constant 0 : i32
    %c0_i32_0 = arith.constant 0 : i32
    %c0_i32_1 = arith.constant 0 : i32
    return %c0_i32, %c0_i32_0 : i32, i32
  }
  func.func @transform_6(%arg0: i32) -> (i32, i32) {
    %c0_i32 = arith.constant 0 : i32
    %c0_i32_0 = arith.constant 0 : i32
    %c0_i32_1 = arith.constant 0 : i32
    return %c0_i32, %c0_i32_0 : i32, i32
  }
  func.func @transform_7(%arg0: i32) -> (i32, i32) {
    %c0_i32 = arith.constant 0 : i32
    %c0_i32_0 = arith.constant 0 : i32
    %c0_i32_1 = arith.constant 0 : i32
    return %c0_i32, %c0_i32_0 : i32, i32
  }
  func.func @transform_8(%arg0: i32) -> (i32, i32) {
    %c0_i32 = arith.constant 0 : i32
    %c0_i32_0 = arith.constant 0 : i32
    %c0_i32_1 = arith.constant 0 : i32
    return %c0_i32, %c0_i32_0 : i32, i32
  }
  func.func @transform_9(%arg0: i32) -> (i32, i32, i32) {
    %c0_i32 = arith.constant 0 : i32
    %c0_i32_0 = arith.constant 0 : i32
    %c0_i32_1 = arith.constant 0 : i32
    return %arg0, %c0_i32, %c0_i32_0 : i32, i32, i32
  }
}

</mosaic_0001>

<llo_original>
// kernel: tpu_custom_call.1
$region0: #{tpu_custom_call.1}
  #allocation0 [shape = 'u32[]', space=smem, size = 0x4, offset = 0x4, fixed_abs, tag = 'smem constant byte address 0x4 - core index']
  #allocation1 [shape = 'u32[144,128]{1,0:T(1,128)}', space=vmem, size = 0x12000, scoped, tag = 'internal scratch']
  #allocation2 [shape = 'f32[1,1]{1,0:T(1,128)S(6)}', space=smem, size = 0x200, scoped, tag = 'scoped memory for tpu_custom_call.1']
  %s0 = inlined_call_operand.vmem [shape: f32[24,48], index: 0, kind: input, shape index: {}]
  %s1 = inlined_call_operand.vmem [shape: f32[24,12], index: 1, kind: input, shape index: {}]
  %s2 = inlined_call_operand.vmem [shape: f32[48,32], index: 2, kind: input, shape index: {}]
  %s3 = inlined_call_operand.vmem [shape: f32[12,32], index: 3, kind: input, shape index: {}]
  %s4 = inlined_call_operand.vmem [shape: f32[1,32], index: 4, kind: input, shape index: {}]
  %s5 = inlined_call_operand.vmem [shape: f32[32,32], index: 5, kind: input, shape index: {}]
  %s6 = inlined_call_operand.vmem [shape: f32[1,32], index: 6, kind: input, shape index: {}]
  %s7 = inlined_call_operand.vmem [shape: f32[1,32], index: 7, kind: input, shape index: {}]
  %s8 = inlined_call_operand.<no memory space> [shape: f32[1,1], index: 8, kind: input, shape index: {}]
  %s9 = inlined_call_operand.hbm [shape: f32[1,1,128], index: 9, kind: output, shape index: {}]
  %s10 = sld [smem:[#allocation0]]
  $region46: #{tpu_custom_call.1} parent=0
    _
  %s12 = ssub.s32 1, %s10
  %s13 = scalar_select 0, %s12, %s10
  %14 = sst [smem:[#allocation2]] %s8
  $region1: #{tpu_custom_call.1} parent=0
    #allocation3 [shape = 'u8[512]{0}', space=vmem, size = 0x400, scoped, tag = 'output window, operand 0, single buffered']
    #allocation4 [shape = 's32[1]{0}', space=sflag, size = 0x4, scoped, tag = 'scoped memory for tpu_custom_call.1']
    %15 = vsyncpa [#allocation4], 0
    // Predicated region
    $region2: #{tpu_custom_call.1} parent=1 // pred_check
      _
    $region3: #{tpu_custom_call.1} parent=1 // pred_check_branch
      %17 = sbr.rel (0) target = $region5
    $region4: #{tpu_custom_call.1} parent=1 // pred_region
      _
    $region5: #{tpu_custom_call.1} parent=1 // pred_fallthru
      _
    // Predicated region
    $region6: #{tpu_custom_call.1} parent=1 // pred_check
      _
    $region7: #{tpu_custom_call.1} parent=1 // pred_check_branch
      %19 = sbr.rel (0) target = $region9
    $region8: #{tpu_custom_call.1} parent=1 // pred_region
      _
    $region9: #{tpu_custom_call.1} parent=1 // pred_fallthru
      _
    // Predicated region
    $region10: #{tpu_custom_call.1} parent=1 // pred_check
      _
    $region11: #{tpu_custom_call.1} parent=1 // pred_check_branch
      %21 = sbr.rel (0) target = $region13
    $region12: #{tpu_custom_call.1} parent=1 // pred_region
      _
    $region13: #{tpu_custom_call.1} parent=1 // pred_fallthru
      _
    // Predicated region
    $region14: #{tpu_custom_call.1} parent=1 // pred_check
      _
    $region15: #{tpu_custom_call.1} parent=1 // pred_check_branch
      %23 = sbr.rel (0) target = $region17
    $region16: #{tpu_custom_call.1} parent=1 // pred_region
      _
    $region17: #{tpu_custom_call.1} parent=1 // pred_fallthru
      _
    // Predicated region
    $region18: #{tpu_custom_call.1} parent=1 // pred_check
      _
    $region19: #{tpu_custom_call.1} parent=1 // pred_check_branch
      %25 = sbr.rel (0) target = $region21
    $region20: #{tpu_custom_call.1} parent=1 // pred_region
      _
    $region21: #{tpu_custom_call.1} parent=1 // pred_fallthru
      _
    // Predicated region
    $region22: #{tpu_custom_call.1} parent=1 // pred_check
      _
    $region23: #{tpu_custom_call.1} parent=1 // pred_check_branch
      %27 = sbr.rel (0) target = $region25
    $region24: #{tpu_custom_call.1} parent=1 // pred_region
      _
    $region25: #{tpu_custom_call.1} parent=1 // pred_fallthru
      _
    // Predicated region
    $region26: #{tpu_custom_call.1} parent=1 // pred_check
      _
    $region27: #{tpu_custom_call.1} parent=1 // pred_check_branch
      %29 = sbr.rel (0) target = $region29
    $region28: #{tpu_custom_call.1} parent=1 // pred_region
      _
    $region29: #{tpu_custom_call.1} parent=1 // pred_fallthru
      _
    // Predicated region
    $region30: #{tpu_custom_call.1} parent=1 // pred_check
      _
    $region31: #{tpu_custom_call.1} parent=1 // pred_check_branch
      %31 = sbr.rel (0) target = $region33
    $region32: #{tpu_custom_call.1} parent=1 // pred_region
      _
    $region33: #{tpu_custom_call.1} parent=1 // pred_fallthru
      _
    // Predicated region
    $region34: #{tpu_custom_call.1} parent=1 // pred_check
      _
    $region35: #{tpu_custom_call.1} parent=1 // pred_check_branch
      %33 = sbr.rel (0) target = $region37
    $region36: #{tpu_custom_call.1} parent=1 // pred_region
      _
    $region37: #{tpu_custom_call.1} parent=1 // pred_fallthru
      _
    %v34 = vld [vmem:[%s0] sm:$0xff]
    %v35 = vld [vmem:[%s0 + $0x8] sm:$0xff]
    %v36 = vld [vmem:[%s0 + $0x10] sm:$0xff]
    %v37 = vld [vmem:[%s0 + $0x18] sm:$0xff]
    %v38 = vld [vmem:[%s0 + $0x20] sm:$0xff]
    %v39 = vld [vmem:[%s0 + $0x28] sm:$0xff]
    %v40 = vld [vmem:[%s0 + $0x30] sm:$0xff]
    %v41 = vld [vmem:[%s0 + $0x38] sm:$0xff]
    %v42 = vld [vmem:[%s0 + $0x40] sm:$0xff]
    %v43 = vld [vmem:[%s0 + $0x48] sm:$0xff]
    %v44 = vld [vmem:[%s0 + $0x50] sm:$0xff]
    %v45 = vld [vmem:[%s0 + $0x58] sm:$0xff]
    %v46 = vld [vmem:[%s0 + $0x60] sm:$0xff]
    %v47 = vld [vmem:[%s0 + $0x68] sm:$0xff]
    %v48 = vld [vmem:[%s0 + $0x70] sm:$0xff]
    %v49 = vld [vmem:[%s0 + $0x78] sm:$0xff]
    %v50 = vld [vmem:[%s2] sm:$0xff]
    %v51 = vld [vmem:[%s2 + $0x8] sm:$0xff]
    %v52 = vld [vmem:[%s2 + $0x10] sm:$0xff]
    %v53 = vld [vmem:[%s2 + $0x18] sm:$0xff]
    %v54 = vld [vmem:[%s2 + $0x20] sm:$0xff]
    %v55 = vld [vmem:[%s2 + $0x28] sm:$0xff]
    %v56 = vld [vmem:[%s1] sm:$0xff]
    %v57 = vld [vmem:[%s1 + $0x8] sm:$0xff]
    %v58 = vld [vmem:[%s1 + $0x10] sm:$0xff]
    %v59 = vld [vmem:[%s1 + $0x18] sm:$0xff]
    %v60 = vld [vmem:[%s1 + $0x20] sm:$0xff]
    %v61 = vld [vmem:[%s1 + $0x28] sm:$0xff]
    %v62 = vld [vmem:[%s1 + $0x30] sm:$0xff]
    %v63 = vld [vmem:[%s1 + $0x38] sm:$0xff]
    %v64 = vld [vmem:[%s1 + $0x40] sm:$0xff]
    %v65 = vld [vmem:[%s1 + $0x48] sm:$0xff]
    %v66 = vld [vmem:[%s1 + $0x50] sm:$0xff]
    %v67 = vld [vmem:[%s1 + $0x58] sm:$0xff]
    %v68 = vld [vmem:[%s1 + $0x60] sm:$0xff]
    %v69 = vld [vmem:[%s1 + $0x68] sm:$0xff]
    %v70 = vld [vmem:[%s1 + $0x70] sm:$0xff]
    %v71 = vld [vmem:[%s1 + $0x78] sm:$0xff]
    %v72 = vld [vmem:[%s3] sm:$0xff]
    %v73 = vld [vmem:[%s3 + $0x8] sm:$0xf]
    %vm74 = vcmask 97280
    %v76 = vsel %vm74, %v56, 0
    %v79 = vsel %vm74, %v57, 0
    %v82 = vsel %vm74, %v58, 0
    %v85 = vsel %vm74, %v59, 0
    %v88 = vsel %vm74, %v60, 0
    %v91 = vsel %vm74, %v61, 0
    %v94 = vsel %vm74, %v62, 0
    %v97 = vsel %vm74, %v63, 0
    %v100 = vsel %vm74, %v64, 0
    %v103 = vsel %vm74, %v65, 0
    %v106 = vsel %vm74, %v66, 0
    %v109 = vsel %vm74, %v67, 0
    %v112 = vsel %vm74, %v68, 0
    %v115 = vsel %vm74, %v69, 0
    %v118 = vsel %vm74, %v70, 0
    %v121 = vsel %vm74, %v71, 0
    %vm123 = vcmask 1043456
    %v125 = vsel %vm123, %v73, 0
    %127 = vmatprep.subr.mxu0 0.0
    %128 = vmatpush1.msra.mxu0 %v72
    %129 = vmatprep.subr.mxu0 0.0
    %130 = vmatpush1.msra.mxu0 %v125
    %131 = vmatprep.subr.mxu0 0.0
    %132 = vmatpush1.msra.mxu0 0.0
    %133 = vmatprep.subr.mxu0 0.0
    %134 = vmatpush1.msra.mxu0 0.0
    %135 = vmatprep.subr.mxu0 0.0
    %136 = vmatpush1.msra.mxu0 0.0
    %137 = vmatprep.subr.mxu0 0.0
    %138 = vmatpush1.msra.mxu0 0.0
    %139 = vmatprep.subr.mxu0 0.0
    %140 = vmatpush1.msra.mxu0 0.0
    %141 = vmatprep.subr.mxu0 0.0
    %142 = vmatpush1.msra.mxu0 0.0
    %143 = vmatprep.subr.mxu0 0.0
    %144 = vmatpush1.msra.mxu0 0.0
    %145 = vmatprep.subr.mxu0 0.0
    %146 = vmatpush1.msra.mxu0 0.0
    %147 = vmatprep.subr.mxu0 0.0
    %148 = vmatpush1.msra.mxu0 0.0
    %149 = vmatprep.subr.mxu0 0.0
    %150 = vmatpush1.msra.mxu0 0.0
    %151 = vmatprep.subr.mxu0 0.0
    %152 = vmatpush1.msra.mxu0 0.0
    %153 = vmatprep.subr.mxu0 0.0
    %154 = vmatpush1.msra.mxu0 0.0
    %155 = vmatprep.subr.mxu0 0.0
    %156 = vmatpush1.msra.mxu0 0.0
    %157 = vmatprep.subr.mxu0 0.0
    %158 = vmatpush1.msra.mxu0 0.0
    %159 = vmatprep.subr.mxu0 0.0
    %160 = vmatpush1.msra.mxu0 0.0
    %161 = vmatprep.subr.mxu0 0.0
    %162 = vmatpush1.msra.mxu0 0.0
    %163 = vmatprep.subr.mxu0 0.0
    %164 = vmatpush1.msra.mxu0 0.0
    %165 = vmatprep.subr.mxu0 0.0
    %166 = vmatpush1.msra.mxu0 0.0
    %167 = vmatprep.subr.mxu0 0.0
    %168 = vmatpush1.msra.mxu0 0.0
    %169 = vmatprep.subr.mxu0 0.0
    %170 = vmatpush1.msra.mxu0 0.0
    %171 = vmatprep.subr.mxu0 0.0
    %172 = vmatpush1.msra.mxu0 0.0
    %173 = vmatprep.subr.mxu0 0.0
    %174 = vmatpush1.msra.mxu0 0.0
    %175 = vmatprep.subr.mxu0 0.0
    %176 = vmatpush1.msra.mxu0 0.0
    %177 = vmatprep.subr.mxu0 0.0
    %178 = vmatpush1.msra.mxu0 0.0
    %179 = vmatprep.subr.mxu0 0.0
    %180 = vmatpush1.msra.mxu0 0.0
    %181 = vmatprep.subr.mxu0 0.0
    %182 = vmatpush1.msra.mxu0 0.0
    %183 = vmatprep.subr.mxu0 0.0
    %184 = vmatpush1.msra.mxu0 0.0
    %185 = vmatprep.subr.mxu0 0.0
    %186 = vmatpush1.msra.mxu0 0.0
    %187 = vmatprep.subr.mxu0 0.0
    %188 = vmatpush1.msra.mxu0 0.0
    %189 = vmatprep.subr.mxu0 0.0
    %190 = vmatpush1.msra.mxu0 0.0
    %191 = vmatprep.mubr.f32.mxu0 0.0
    %192 = vmatmul.mubr.f32.gmra.mrb[0].mxu0 %v76
    %v193 = vpop.f32.mrb[0].mxu0
    %v194 = vadd.f32 0.0, %v193
    %v195 = vpop.f32.mrb[0].mxu0
    %196 = vmatprep.mubr.f32.mxu0 0.0
    %197 = vmatmul.mubr.f32.gmra.mrb[0].mxu0 %v79
    %v198 = vpop.f32.mrb[0].mxu0
    %v199 = vadd.f32 0.0, %v198
    %v200 = vpop.f32.mrb[0].mxu0
    %201 = vmatprep.mubr.f32.mxu0 0.0
    %202 = vmatmul.mubr.f32.gmra.mrb[0].mxu0 %v82
    %v203 = vpop.f32.mrb[0].mxu0
    %v204 = vadd.f32 0.0, %v203
    %v205 = vpop.f32.mrb[0].mxu0
    %206 = vmatprep.mubr.f32.mxu0 0.0
    %207 = vmatmul.mubr.f32.gmra.mrb[0].mxu0 %v85
    %v208 = vpop.f32.mrb[0].mxu0
    %v209 = vadd.f32 0.0, %v208
    %v210 = vpop.f32.mrb[0].mxu0
    %211 = vmatprep.mubr.f32.mxu0 0.0
    %212 = vmatmul.mubr.f32.gmra.mrb[0].mxu0 %v88
    %v213 = vpop.f32.mrb[0].mxu0
    %v214 = vadd.f32 0.0, %v213
    %v215 = vpop.f32.mrb[0].mxu0
    %216 = vmatprep.mubr.f32.mxu0 0.0
    %217 = vmatmul.mubr.f32.gmra.mrb[0].mxu0 %v91
    %v218 = vpop.f32.mrb[0].mxu0
    %v219 = vadd.f32 0.0, %v218
    %v220 = vpop.f32.mrb[0].mxu0
    %221 = vmatprep.mubr.f32.mxu0 0.0
    %222 = vmatmul.mubr.f32.gmra.mrb[0].mxu0 %v94
    %v223 = vpop.f32.mrb[0].mxu0
    %v224 = vadd.f32 0.0, %v223
    %v225 = vpop.f32.mrb[0].mxu0
    %226 = vmatprep.mubr.f32.mxu0 0.0
    %227 = vmatmul.mubr.f32.gmra.mrb[0].mxu0 %v97
    %v228 = vpop.f32.mrb[0].mxu0
    %v229 = vadd.f32 0.0, %v228
    %v230 = vpop.f32.mrb[0].mxu0
    %231 = vmatprep.mubr.f32.mxu0 0.0
    %232 = vmatmul.mubr.f32.gmra.mrb[0].mxu0 %v100
    %v233 = vpop.f32.mrb[0].mxu0
    %v234 = vadd.f32 0.0, %v233
    %v235 = vpop.f32.mrb[0].mxu0
    %236 = vmatprep.mubr.f32.mxu0 0.0
    %237 = vmatmul.mubr.f32.gmra.mrb[0].mxu0 %v103
    %v238 = vpop.f32.mrb[0].mxu0
    %v239 = vadd.f32 0.0, %v238
    %v240 = vpop.f32.mrb[0].mxu0
    %241 = vmatprep.mubr.f32.mxu0 0.0
    %242 = vmatmul.mubr.f32.gmra.mrb[0].mxu0 %v106
    %v243 = vpop.f32.mrb[0].mxu0
    %v244 = vadd.f32 0.0, %v243
    %v245 = vpop.f32.mrb[0].mxu0
    %246 = vmatprep.mubr.f32.mxu0 0.0
    %247 = vmatmul.mubr.f32.gmra.mrb[0].mxu0 %v109
    %v248 = vpop.f32.mrb[0].mxu0
    %v249 = vadd.f32 0.0, %v248
    %v250 = vpop.f32.mrb[0].mxu0
    %251 = vmatprep.mubr.f32.mxu0 0.0
    %252 = vmatmul.mubr.f32.gmra.mrb[0].mxu0 %v112
    %v253 = vpop.f32.mrb[0].mxu0
    %v254 = vadd.f32 0.0, %v253
    %v255 = vpop.f32.mrb[0].mxu0
    %256 = vmatprep.mubr.f32.mxu0 0.0
    %257 = vmatmul.mubr.f32.gmra.mrb[0].mxu0 %v115
    %v258 = vpop.f32.mrb[0].mxu0
    %v259 = vadd.f32 0.0, %v258
    %v260 = vpop.f32.mrb[0].mxu0
    %261 = vmatprep.mubr.f32.mxu0 0.0
    %262 = vmatmul.mubr.f32.gmra.mrb[0].mxu0 %v118
    %v263 = vpop.f32.mrb[0].mxu0
    %v264 = vadd.f32 0.0, %v263
    %v265 = vpop.f32.mrb[0].mxu0
    %266 = vmatprep.mubr.f32.mxu0 0.0
    %267 = vmatmul.mubr.f32.gmra.mrb[0].mxu0 %v121
    %v268 = vpop.f32.mrb[0].mxu0
    %v269 = vadd.f32 0.0, %v268
    %v270 = vpop.f32.mrb[0].mxu0
    %271 = vdwg.mxu0
    %vm272 = vcmask 392192
    %v274 = vsel %vm272, %v34, 0
    %v277 = vsel %vm272, %v35, 0
    %v280 = vsel %vm272, %v36, 0
    %v283 = vsel %vm272, %v37, 0
    %v286 = vsel %vm272, %v38, 0
    %v289 = vsel %vm272, %v39, 0
    %v292 = vsel %vm272, %v40, 0
    %v295 = vsel %vm272, %v41, 0
    %v298 = vsel %vm272, %v42, 0
    %v301 = vsel %vm272, %v43, 0
    %v304 = vsel %vm272, %v44, 0
    %v307 = vsel %vm272, %v45, 0
    %v310 = vsel %vm272, %v46, 0
    %v313 = vsel %vm272, %v47, 0
    %v316 = vsel %vm272, %v48, 0
    %v319 = vsel %vm272, %v49, 0
    %321 = vmatprep.subr.mxu0 0.0
    %322 = vmatpush1.msra.mxu0 %v50
    %323 = vmatprep.subr.mxu0 0.0
    %324 = vmatpush1.msra.mxu0 %v51
    %325 = vmatprep.subr.mxu0 0.0
    %326 = vmatpush1.msra.mxu0 %v52
    %327 = vmatprep.subr.mxu0 0.0
    %328 = vmatpush1.msra.mxu0 %v53
    %329 = vmatprep.subr.mxu0 0.0
    %330 = vmatpush1.msra.mxu0 %v54
    %331 = vmatprep.subr.mxu0 0.0
    %332 = vmatpush1.msra.mxu0 %v55
    %333 = vmatprep.subr.mxu0 0.0
    %334 = vmatpush1.msra.mxu0 0.0
    %335 = vmatprep.subr.mxu0 0.0
    %336 = vmatpush1.msra.mxu0 0.0
    %337 = vmatprep.subr.mxu0 0.0
    %338 = vmatpush1.msra.mxu0 0.0
    %339 = vmatprep.subr.mxu0 0.0
    %340 = vmatpush1.msra.mxu0 0.0
    %341 = vmatprep.subr.mxu0 0.0
    %342 = vmatpush1.msra.mxu0 0.0
    %343 = vmatprep.subr.mxu0 0.0
    %344 = vmatpush1.msra.mxu0 0.0
    %345 = vmatprep.subr.mxu0 0.0
    %346 = vmatpush1.msra.mxu0 0.0
    %347 = vmatprep.subr.mxu0 0.0
    %348 = vmatpush1.msra.mxu0 0.0
    %349 = vmatprep.subr.mxu0 0.0
    %350 = vmatpush1.msra.mxu0 0.0
    %351 = vmatprep.subr.mxu0 0.0
    %352 = vmatpush1.msra.mxu0 0.0
    %353 = vmatprep.subr.mxu0 0.0
    %354 = vmatpush1.msra.mxu0 0.0
    %355 = vmatprep.subr.mxu0 0.0
    %356 = vmatpush1.msra.mxu0 0.0
    %357 = vmatprep.subr.mxu0 0.0
    %358 = vmatpush1.msra.mxu0 0.0
    %359 = vmatprep.subr.mxu0 0.0
    %360 = vmatpush1.msra.mxu0 0.0
    %361 = vmatprep.subr.mxu0 0.0
    %362 = vmatpush1.msra.mxu0 0.0
    %363 = vmatprep.subr.mxu0 0.0
    %364 = vmatpush1.msra.mxu0 0.0
    %365 = vmatprep.subr.mxu0 0.0
    %366 = vmatpush1.msra.mxu0 0.0
    %367 = vmatprep.subr.mxu0 0.0
    %368 = vmatpush1.msra.mxu0 0.0
    %369 = vmatprep.subr.mxu0 0.0
    %370 = vmatpush1.msra.mxu0 0.0
    %371 = vmatprep.subr.mxu0 0.0
    %372 = vmatpush1.msra.mxu0 0.0
    %373 = vmatprep.subr.mxu0 0.0
    %374 = vmatpush1.msra.mxu0 0.0
    %375 = vmatprep.subr.mxu0 0.0
    %376 = vmatpush1.msra.mxu0 0.0
    %377 = vmatprep.subr.mxu0 0.0
    %378 = vmatpush1.msra.mxu0 0.0
    %379 = vmatprep.subr.mxu0 0.0
    %380 = vmatpush1.msra.mxu0 0.0
    %381 = vmatprep.subr.mxu0 0.0
    %382 = vmatpush1.msra.mxu0 0.0
    %383 = vmatprep.subr.mxu0 0.0
    %384 = vmatpush1.msra.mxu0 0.0
    %385 = vmatprep.mubr.f32.mxu0 0.0
    %386 = vmatmul.mubr.f32.gmra.mrb[0].mxu0 %v274
    %v387 = vpop.f32.mrb[0].mxu0
    %v388 = vadd.f32 %v194, %v387
    %v389 = vpop.f32.mrb[0].mxu0
    %390 = vmatprep.mubr.f32.mxu0 0.0
    %391 = vmatmul.mubr.f32.gmra.mrb[0].mxu0 %v277
    %v392 = vpop.f32.mrb[0].mxu0
    %v393 = vadd.f32 %v199, %v392
    %v394 = vpop.f32.mrb[0].mxu0
    %395 = vmatprep.mubr.f32.mxu0 0.0
    %396 = vmatmul.mubr.f32.gmra.mrb[0].mxu0 %v280
    %v397 = vpop.f32.mrb[0].mxu0
    %v398 = vadd.f32 %v204, %v397
    %v399 = vpop.f32.mrb[0].mxu0
    %400 = vmatprep.mubr.f32.mxu0 0.0
    %401 = vmatmul.mubr.f32.gmra.mrb[0].mxu0 %v283
    %v402 = vpop.f32.mrb[0].mxu0
    %v403 = vadd.f32 %v209, %v402
    %v404 = vpop.f32.mrb[0].mxu0
    %405 = vmatprep.mubr.f32.mxu0 0.0
    %406 = vmatmul.mubr.f32.gmra.mrb[0].mxu0 %v286
    %v407 = vpop.f32.mrb[0].mxu0
    %v408 = vadd.f32 %v214, %v407
    %v409 = vpop.f32.mrb[0].mxu0
    %410 = vmatprep.mubr.f32.mxu0 0.0
    %411 = vmatmul.mubr.f32.gmra.mrb[0].mxu0 %v289
    %v412 = vpop.f32.mrb[0].mxu0
    %v413 = vadd.f32 %v219, %v412
    %v414 = vpop.f32.mrb[0].mxu0
    %415 = vmatprep.mubr.f32.mxu0 0.0
    %416 = vmatmul.mubr.f32.gmra.mrb[0].mxu0 %v292
    %v417 = vpop.f32.mrb[0].mxu0
    %v418 = vadd.f32 %v224, %v417
    %v419 = vpop.f32.mrb[0].mxu0
    %420 = vmatprep.mubr.f32.mxu0 0.0
    %421 = vmatmul.mubr.f32.gmra.mrb[0].mxu0 %v295
    %v422 = vpop.f32.mrb[0].mxu0
    %v423 = vadd.f32 %v229, %v422
    %v424 = vpop.f32.mrb[0].mxu0
    %425 = vmatprep.mubr.f32.mxu0 0.0
    %426 = vmatmul.mubr.f32.gmra.mrb[0].mxu0 %v298
    %v427 = vpop.f32.mrb[0].mxu0
    %v428 = vadd.f32 %v234, %v427
    %v429 = vpop.f32.mrb[0].mxu0
    %430 = vmatprep.mubr.f32.mxu0 0.0
    %431 = vmatmul.mubr.f32.gmra.mrb[0].mxu0 %v301
    %v432 = vpop.f32.mrb[0].mxu0
    %v433 = vadd.f32 %v239, %v432
    %v434 = vpop.f32.mrb[0].mxu0
    %435 = vmatprep.mubr.f32.mxu0 0.0
    %436 = vmatmul.mubr.f32.gmra.mrb[0].mxu0 %v304
    %v437 = vpop.f32.mrb[0].mxu0
    %v438 = vadd.f32 %v244, %v437
    %v439 = vpop.f32.mrb[0].mxu0
    %440 = vmatprep.mubr.f32.mxu0 0.0
    %441 = vmatmul.mubr.f32.gmra.mrb[0].mxu0 %v307
    %v442 = vpop.f32.mrb[0].mxu0
    %v443 = vadd.f32 %v249, %v442
    %v444 = vpop.f32.mrb[0].mxu0
    %445 = vmatprep.mubr.f32.mxu0 0.0
    %446 = vmatmul.mubr.f32.gmra.mrb[0].mxu0 %v310
    %v447 = vpop.f32.mrb[0].mxu0
    %v448 = vadd.f32 %v254, %v447
    %v449 = vpop.f32.mrb[0].mxu0
    %450 = vmatprep.mubr.f32.mxu0 0.0
    %451 = vmatmul.mubr.f32.gmra.mrb[0].mxu0 %v313
    %v452 = vpop.f32.mrb[0].mxu0
    %v453 = vadd.f32 %v259, %v452
    %v454 = vpop.f32.mrb[0].mxu0
    %455 = vmatprep.mubr.f32.mxu0 0.0
    %456 = vmatmul.mubr.f32.gmra.mrb[0].mxu0 %v316
    %v457 = vpop.f32.mrb[0].mxu0
    %v458 = vadd.f32 %v264, %v457
    %v459 = vpop.f32.mrb[0].mxu0
    %460 = vmatprep.mubr.f32.mxu0 0.0
    %461 = vmatmul.mubr.f32.gmra.mrb[0].mxu0 %v319
    %v462 = vpop.f32.mrb[0].mxu0
    %v463 = vadd.f32 %v269, %v462
    %v464 = vpop.f32.mrb[0].mxu0
    %465 = vdwg.mxu0
    %v466 = vld [vmem:[%s4] sm:$0x1]
    %v468 = vlaneseq
    %v469 = vshrl.u32 %v468, 7
    %v470 = vsub.s32 0, %v469
    %v471 = vrot.slane %v466, %v470
    %v473 = vadd.f32 %v388, %v471
    %v474 = vadd.f32 %v393, %v471
    %v475 = vadd.f32 %v398, %v471
    %v476 = vadd.f32 %v403, %v471
    %v477 = vadd.f32 %v408, %v471
    %v478 = vadd.f32 %v413, %v471
    %v479 = vadd.f32 %v418, %v471
    %v480 = vadd.f32 %v423, %v471
    %v481 = vadd.f32 %v428, %v471
    %v482 = vadd.f32 %v433, %v471
    %v483 = vadd.f32 %v438, %v471
    %v484 = vadd.f32 %v443, %v471
    %v485 = vadd.f32 %v448, %v471
    %v486 = vadd.f32 %v453, %v471
    %v487 = vadd.f32 %v458, %v471
    %v488 = vadd.f32 %v463, %v471
    %v489 = vmax.f32 %v473, 0.0
    %v490 = vmax.f32 %v474, 0.0
    %v491 = vmax.f32 %v475, 0.0
    %v492 = vmax.f32 %v476, 0.0
    %v493 = vmax.f32 %v477, 0.0
    %v494 = vmax.f32 %v478, 0.0
    %v495 = vmax.f32 %v479, 0.0
    %v496 = vmax.f32 %v480, 0.0
    %v497 = vmax.f32 %v481, 0.0
    %v498 = vmax.f32 %v482, 0.0
    %v499 = vmax.f32 %v483, 0.0
    %v500 = vmax.f32 %v484, 0.0
    %v501 = vmax.f32 %v485, 0.0
    %v502 = vmax.f32 %v486, 0.0
    %v503 = vmax.f32 %v487, 0.0
    %v504 = vmax.f32 %v488, 0.0
    %v505 = vld [vmem:[%s5] sm:$0xff]
    %v506 = vld [vmem:[%s5 + $0x8] sm:$0xff]
    %v507 = vld [vmem:[%s5 + $0x10] sm:$0xff]
    %v508 = vld [vmem:[%s5 + $0x18] sm:$0xff]
    %v509 = vld [vmem:[%s6] sm:$0x1]
    %v511 = vlaneseq
    %v512 = vshrl.u32 %v511, 7
    %v513 = vsub.s32 0, %v512
    %v514 = vrot.slane %v509, %v513
    %vm516 = vcmask 261120
    %v518 = vsel %vm516, %v489, 0
    %v521 = vsel %vm516, %v490, 0
    %v524 = vsel %vm516, %v491, 0
    %v527 = vsel %vm516, %v492, 0
    %v530 = vsel %vm516, %v493, 0
    %v533 = vsel %vm516, %v494, 0
    %v536 = vsel %vm516, %v495, 0
    %v539 = vsel %vm516, %v496, 0
    %v542 = vsel %vm516, %v497, 0
    %v545 = vsel %vm516, %v498, 0
    %v548 = vsel %vm516, %v499, 0
    %v551 = vsel %vm516, %v500, 0
    %v554 = vsel %vm516, %v501, 0
    %v557 = vsel %vm516, %v502, 0
    %v560 = vsel %vm516, %v503, 0
    %v563 = vsel %vm516, %v504, 0
    %565 = vmatprep.subr.mxu0 0.0
    %566 = vmatpush1.msra.mxu0 %v505
    %567 = vmatprep.subr.mxu0 0.0
    %568 = vmatpush1.msra.mxu0 %v506
    %569 = vmatprep.subr.mxu0 0.0
    %570 = vmatpush1.msra.mxu0 %v507
    %571 = vmatprep.subr.mxu0 0.0
    %572 = vmatpush1.msra.mxu0 %v508
    %573 = vmatprep.subr.mxu0 0.0
    %574 = vmatpush1.msra.mxu0 0.0
    %575 = vmatprep.subr.mxu0 0.0
    %576 = vmatpush1.msra.mxu0 0.0
    %577 = vmatprep.subr.mxu0 0.0
    %578 = vmatpush1.msra.mxu0 0.0
    %579 = vmatprep.subr.mxu0 0.0
    %580 = vmatpush1.msra.mxu0 0.0
    %581 = vmatprep.subr.mxu0 0.0
    %582 = vmatpush1.msra.mxu0 0.0
    %583 = vmatprep.subr.mxu0 0.0
    %584 = vmatpush1.msra.mxu0 0.0
    %585 = vmatprep.subr.mxu0 0.0
    %586 = vmatpush1.msra.mxu0 0.0
    %587 = vmatprep.subr.mxu0 0.0
    %588 = vmatpush1.msra.mxu0 0.0
    %589 = vmatprep.subr.mxu0 0.0
    %590 = vmatpush1.msra.mxu0 0.0
    %591 = vmatprep.subr.mxu0 0.0
    %592 = vmatpush1.msra.mxu0 0.0
    %593 = vmatprep.subr.mxu0 0.0
    %594 = vmatpush1.msra.mxu0 0.0
    %595 = vmatprep.subr.mxu0 0.0
    %596 = vmatpush1.msra.mxu0 0.0
    %597 = vmatprep.subr.mxu0 0.0
    %598 = vmatpush1.msra.mxu0 0.0
    %599 = vmatprep.subr.mxu0 0.0
    %600 = vmatpush1.msra.mxu0 0.0
    %601 = vmatprep.subr.mxu0 0.0
    %602 = vmatpush1.msra.mxu0 0.0
    %603 = vmatprep.subr.mxu0 0.0
    %604 = vmatpush1.msra.mxu0 0.0
    %605 = vmatprep.subr.mxu0 0.0
    %606 = vmatpush1.msra.mxu0 0.0
    %607 = vmatprep.subr.mxu0 0.0
    %608 = vmatpush1.msra.mxu0 0.0
    %609 = vmatprep.subr.mxu0 0.0
    %610 = vmatpush1.msra.mxu0 0.0
    %611 = vmatprep.subr.mxu0 0.0
    %612 = vmatpush1.msra.mxu0 0.0
    %613 = vmatprep.subr.mxu0 0.0
    %614 = vmatpush1.msra.mxu0 0.0
    %615 = vmatprep.subr.mxu0 0.0
    %616 = vmatpush1.msra.mxu0 0.0
    %617 = vmatprep.subr.mxu0 0.0
    %618 = vmatpush1.msra.mxu0 0.0
    %619 = vmatprep.subr.mxu0 0.0
    %620 = vmatpush1.msra.mxu0 0.0
    %621 = vmatprep.subr.mxu0 0.0
    %622 = vmatpush1.msra.mxu0 0.0
    %623 = vmatprep.subr.mxu0 0.0
    %624 = vmatpush1.msra.mxu0 0.0
    %625 = vmatprep.subr.mxu0 0.0
    %626 = vmatpush1.msra.mxu0 0.0
    %627 = vmatprep.subr.mxu0 0.0
    %628 = vmatpush1.msra.mxu0 0.0
    %629 = vmatprep.mubr.f32.mxu0 0.0
    %630 = vmatmul.mubr.f32.gmra.mrb[0].mxu0 %v518
    %v631 = vpop.f32.mrb[0].mxu0
    %v632 = vadd.f32 %v514, %v631
    %v633 = vpop.f32.mrb[0].mxu0
    %634 = vmatprep.mubr.f32.mxu0 0.0
    %635 = vmatmul.mubr.f32.gmra.mrb[0].mxu0 %v521
    %v636 = vpop.f32.mrb[0].mxu0
    %v637 = vadd.f32 %v514, %v636
    %v638 = vpop.f32.mrb[0].mxu0
    %639 = vmatprep.mubr.f32.mxu0 0.0
    %640 = vmatmul.mubr.f32.gmra.mrb[0].mxu0 %v524
    %v641 = vpop.f32.mrb[0].mxu0
    %v642 = vadd.f32 %v514, %v641
    %v643 = vpop.f32.mrb[0].mxu0
    %644 = vmatprep.mubr.f32.mxu0 0.0
    %645 = vmatmul.mubr.f32.gmra.mrb[0].mxu0 %v527
    %v646 = vpop.f32.mrb[0].mxu0
    %v647 = vadd.f32 %v514, %v646
    %v648 = vpop.f32.mrb[0].mxu0
    %649 = vmatprep.mubr.f32.mxu0 0.0
    %650 = vmatmul.mubr.f32.gmra.mrb[0].mxu0 %v530
    %v651 = vpop.f32.mrb[0].mxu0
    %v652 = vadd.f32 %v514, %v651
    %v653 = vpop.f32.mrb[0].mxu0
    %654 = vmatprep.mubr.f32.mxu0 0.0
    %655 = vmatmul.mubr.f32.gmra.mrb[0].mxu0 %v533
    %v656 = vpop.f32.mrb[0].mxu0
    %v657 = vadd.f32 %v514, %v656
    %v658 = vpop.f32.mrb[0].mxu0
    %659 = vmatprep.mubr.f32.mxu0 0.0
    %660 = vmatmul.mubr.f32.gmra.mrb[0].mxu0 %v536
    %v661 = vpop.f32.mrb[0].mxu0
    %v662 = vadd.f32 %v514, %v661
    %v663 = vpop.f32.mrb[0].mxu0
    %664 = vmatprep.mubr.f32.mxu0 0.0
    %665 = vmatmul.mubr.f32.gmra.mrb[0].mxu0 %v539
    %v666 = vpop.f32.mrb[0].mxu0
    %v667 = vadd.f32 %v514, %v666
    %v668 = vpop.f32.mrb[0].mxu0
    %669 = vmatprep.mubr.f32.mxu0 0.0
    %670 = vmatmul.mubr.f32.gmra.mrb[0].mxu0 %v542
    %v671 = vpop.f32.mrb[0].mxu0
    %v672 = vadd.f32 %v514, %v671
    %v673 = vpop.f32.mrb[0].mxu0
    %674 = vmatprep.mubr.f32.mxu0 0.0
    %675 = vmatmul.mubr.f32.gmra.mrb[0].mxu0 %v545
    %v676 = vpop.f32.mrb[0].mxu0
    %v677 = vadd.f32 %v514, %v676
    %v678 = vpop.f32.mrb[0].mxu0
    %679 = vmatprep.mubr.f32.mxu0 0.0
    %680 = vmatmul.mubr.f32.gmra.mrb[0].mxu0 %v548
    %v681 = vpop.f32.mrb[0].mxu0
    %v682 = vadd.f32 %v514, %v681
    %v683 = vpop.f32.mrb[0].mxu0
    %684 = vmatprep.mubr.f32.mxu0 0.0
    %685 = vmatmul.mubr.f32.gmra.mrb[0].mxu0 %v551
    %v686 = vpop.f32.mrb[0].mxu0
    %v687 = vadd.f32 %v514, %v686
    %v688 = vpop.f32.mrb[0].mxu0
    %689 = vmatprep.mubr.f32.mxu0 0.0
    %690 = vmatmul.mubr.f32.gmra.mrb[0].mxu0 %v554
    %v691 = vpop.f32.mrb[0].mxu0
    %v692 = vadd.f32 %v514, %v691
    %v693 = vpop.f32.mrb[0].mxu0
    %694 = vmatprep.mubr.f32.mxu0 0.0
    %695 = vmatmul.mubr.f32.gmra.mrb[0].mxu0 %v557
    %v696 = vpop.f32.mrb[0].mxu0
    %v697 = vadd.f32 %v514, %v696
    %v698 = vpop.f32.mrb[0].mxu0
    %699 = vmatprep.mubr.f32.mxu0 0.0
    %700 = vmatmul.mubr.f32.gmra.mrb[0].mxu0 %v560
    %v701 = vpop.f32.mrb[0].mxu0
    %v702 = vadd.f32 %v514, %v701
    %v703 = vpop.f32.mrb[0].mxu0
    %704 = vmatprep.mubr.f32.mxu0 0.0
    %705 = vmatmul.mubr.f32.gmra.mrb[0].mxu0 %v563
    %v706 = vpop.f32.mrb[0].mxu0
    %v707 = vadd.f32 %v514, %v706
    %v708 = vpop.f32.mrb[0].mxu0
    %709 = vdwg.mxu0
    %v710 = vmax.f32 %v632, 0.0
    %v711 = vmax.f32 %v637, 0.0
    %v712 = vmax.f32 %v642, 0.0
    %v713 = vmax.f32 %v647, 0.0
    %v714 = vmax.f32 %v652, 0.0
    %v715 = vmax.f32 %v657, 0.0
    %v716 = vmax.f32 %v662, 0.0
    %v717 = vmax.f32 %v667, 0.0
    %v718 = vmax.f32 %v672, 0.0
    %v719 = vmax.f32 %v677, 0.0
    %v720 = vmax.f32 %v682, 0.0
    %v721 = vmax.f32 %v687, 0.0
    %v722 = vmax.f32 %v692, 0.0
    %v723 = vmax.f32 %v697, 0.0
    %v724 = vmax.f32 %v702, 0.0
    %v725 = vmax.f32 %v707, 0.0
    %v726 = vld [vmem:[%s7] sm:$0x1]
    %v728 = vlaneseq
    %v729 = vshrl.u32 %v728, 7
    %v730 = vsub.s32 0, %v729
    %v731 = vrot.slane %v726, %v730
    %v733 = vmul.f32 %v710, %v731
    %v734 = vmul.f32 %v711, %v731
    %v735 = vmul.f32 %v712, %v731
    %v736 = vmul.f32 %v713, %v731
    %v737 = vmul.f32 %v714, %v731
    %v738 = vmul.f32 %v715, %v731
    %v739 = vmul.f32 %v716, %v731
    %v740 = vmul.f32 %v717, %v731
    %v741 = vmul.f32 %v718, %v731
    %v742 = vmul.f32 %v719, %v731
    %v743 = vmul.f32 %v720, %v731
    %v744 = vmul.f32 %v721, %v731
    %v745 = vmul.f32 %v722, %v731
    %v746 = vmul.f32 %v723, %v731
    %v747 = vmul.f32 %v724, %v731
    %v748 = vmul.f32 %v725, %v731
    %v749 = vsel %vm516, %v733, 0.0
    %750 = vadd.xlane.f32.xlu0 %v749
    %v751 = vpop.xlane.xlu0 %750
    %v752 = vsel %vm516, %v734, 0.0
    %753 = vadd.xlane.f32.xlu0 %v752
    %v754 = vpop.xlane.xlu0 %753
    %v755 = vsel %vm516, %v735, 0.0
    %756 = vadd.xlane.f32.xlu0 %v755
    %v757 = vpop.xlane.xlu0 %756
    %v758 = vsel %vm516, %v736, 0.0
    %759 = vadd.xlane.f32.xlu0 %v758
    %v760 = vpop.xlane.xlu0 %759
    %v761 = vsel %vm516, %v737, 0.0
    %762 = vadd.xlane.f32.xlu0 %v761
    %v763 = vpop.xlane.xlu0 %762
    %v764 = vsel %vm516, %v738, 0.0
    %765 = vadd.xlane.f32.xlu0 %v764
    %v766 = vpop.xlane.xlu0 %765
    %v767 = vsel %vm516, %v739, 0.0
    %768 = vadd.xlane.f32.xlu0 %v767
    %v769 = vpop.xlane.xlu0 %768
    %v770 = vsel %vm516, %v740, 0.0
    %771 = vadd.xlane.f32.xlu0 %v770
    %v772 = vpop.xlane.xlu0 %771
    %v773 = vsel %vm516, %v741, 0.0
    %774 = vadd.xlane.f32.xlu0 %v773
    %v775 = vpop.xlane.xlu0 %774
    %v776 = vsel %vm516, %v742, 0.0
    %777 = vadd.xlane.f32.xlu0 %v776
    %v778 = vpop.xlane.xlu0 %777
    %v779 = vsel %vm516, %v743, 0.0
    %780 = vadd.xlane.f32.xlu0 %v779
    %v781 = vpop.xlane.xlu0 %780
    %v782 = vsel %vm516, %v744, 0.0
    %783 = vadd.xlane.f32.xlu0 %v782
    %v784 = vpop.xlane.xlu0 %783
    %v785 = vsel %vm516, %v745, 0.0
    %786 = vadd.xlane.f32.xlu0 %v785
    %v787 = vpop.xlane.xlu0 %786
    %v788 = vsel %vm516, %v746, 0.0
    %789 = vadd.xlane.f32.xlu0 %v788
    %v790 = vpop.xlane.xlu0 %789
    %v791 = vsel %vm516, %v747, 0.0
    %792 = vadd.xlane.f32.xlu0 %v791
    %v793 = vpop.xlane.xlu0 %792
    %v794 = vsel %vm516, %v748, 0.0
    %795 = vadd.xlane.f32.xlu0 %v794
    %v796 = vpop.xlane.xlu0 %795
    %s797 = sld [smem:[#allocation2]]
    %v798 = vstv %s797
    %v799 = vadd.f32 %v751, %v798
    %v800 = vadd.f32 %v754, %v798
    %v801 = vadd.f32 %v757, %v798
    %v802 = vadd.f32 %v760, %v798
    %v803 = vadd.f32 %v763, %v798
    %v804 = vadd.f32 %v766, %v798
    %v805 = vadd.f32 %v769, %v798
    %v806 = vadd.f32 %v772, %v798
    %v807 = vadd.f32 %v775, %v798
    %v808 = vadd.f32 %v778, %v798
    %v809 = vadd.f32 %v781, %v798
    %v810 = vadd.f32 %v784, %v798
    %v811 = vadd.f32 %v787, %v798
    %v812 = vadd.f32 %v790, %v798
    %v813 = vadd.f32 %v793, %v798
    %v814 = vadd.f32 %v796, %v798
    %v831 = vlaneseq
    %v832 = vand.u32 %v831, 127
    %v833 = vlaneseq
    %v834 = vshrl.u32 %v833, 7
    %v835 = vsub.s32 %v832, %v834
    %v836 = vrot.slane %v799, %v835
    %v837 = vadd.s32 %v832, 4294967288
    %v838 = vlaneseq
    %v839 = vshrl.u32 %v838, 7
    %v840 = vsub.s32 %v837, %v839
    %v841 = vrot.slane %v800, %v840
    %vm842 = vcmask 130112
    %v843 = vsel %vm842, %v841, %v836
    %v844 = vadd.s32 %v832, 4294967280
    %v845 = vlaneseq
    %v846 = vshrl.u32 %v845, 7
    %v847 = vsub.s32 %v844, %v846
    %v848 = vrot.slane %v801, %v847
    %vm849 = vcmask 195712
    %v850 = vsel %vm849, %v848, %v843
    %v851 = vadd.s32 %v832, 4294967272
    %v852 = vlaneseq
    %v853 = vshrl.u32 %v852, 7
    %v854 = vsub.s32 %v851, %v853
    %v855 = vrot.slane %v802, %v854
    %vm856 = vcmask 261312
    %v857 = vsel %vm856, %v855, %v850
    %v858 = vadd.s32 %v832, 4294967264
    %v859 = vlaneseq
    %v860 = vshrl.u32 %v859, 7
    %v861 = vsub.s32 %v858, %v860
    %v862 = vrot.slane %v803, %v861
    %vm863 = vcmask 326912
    %v864 = vsel %vm863, %v862, %v857
    %v865 = vadd.s32 %v832, 4294967256
    %v866 = vlaneseq
    %v867 = vshrl.u32 %v866, 7
    %v868 = vsub.s32 %v865, %v867
    %v869 = vrot.slane %v804, %v868
    %vm870 = vcmask 392512
    %v871 = vsel %vm870, %v869, %v864
    %v872 = vadd.s32 %v832, 4294967248
    %v873 = vlaneseq
    %v874 = vshrl.u32 %v873, 7
    %v875 = vsub.s32 %v872, %v874
    %v876 = vrot.slane %v805, %v875
    %vm877 = vcmask 458112
    %v878 = vsel %vm877, %v876, %v871
    %v879 = vadd.s32 %v832, 4294967240
    %v880 = vlaneseq
    %v881 = vshrl.u32 %v880, 7
    %v882 = vsub.s32 %v879, %v881
    %v883 = vrot.slane %v806, %v882
    %vm884 = vcmask 523712
    %v885 = vsel %vm884, %v883, %v878
    %v886 = vadd.s32 %v832, 4294967232
    %v887 = vlaneseq
    %v888 = vshrl.u32 %v887, 7
    %v889 = vsub.s32 %v886, %v888
    %v890 = vrot.slane %v807, %v889
    %vm891 = vcmask 589312
    %v892 = vsel %vm891, %v890, %v885
    %v893 = vadd.s32 %v832, 4294967224
    %v894 = vlaneseq
    %v895 = vshrl.u32 %v894, 7
    %v896 = vsub.s32 %v893, %v895
    %v897 = vrot.slane %v808, %v896
    %vm898 = vcmask 654912
    %v899 = vsel %vm898, %v897, %v892
    %v900 = vadd.s32 %v832, 4294967216
    %v901 = vlaneseq
    %v902 = vshrl.u32 %v901, 7
    %v903 = vsub.s32 %v900, %v902
    %v904 = vrot.slane %v809, %v903
    %vm905 = vcmask 720512
    %v906 = vsel %vm905, %v904, %v899
    %v907 = vadd.s32 %v832, 4294967208
    %v908 = vlaneseq
    %v909 = vshrl.u32 %v908, 7
    %v910 = vsub.s32 %v907, %v909
    %v911 = vrot.slane %v810, %v910
    %vm912 = vcmask 786112
    %v913 = vsel %vm912, %v911, %v906
    %v914 = vadd.s32 %v832, 4294967200
    %v915 = vlaneseq
    %v916 = vshrl.u32 %v915, 7
    %v917 = vsub.s32 %v914, %v916
    %v918 = vrot.slane %v811, %v917
    %vm919 = vcmask 851712
    %v920 = vsel %vm919, %v918, %v913
    %v921 = vadd.s32 %v832, 4294967192
    %v922 = vlaneseq
    %v923 = vshrl.u32 %v922, 7
    %v924 = vsub.s32 %v921, %v923
    %v925 = vrot.slane %v812, %v924
    %vm926 = vcmask 917312
    %v927 = vsel %vm926, %v925, %v920
    %v928 = vadd.s32 %v832, 4294967184
    %v929 = vlaneseq
    %v930 = vshrl.u32 %v929, 7
    %v931 = vsub.s32 %v928, %v930
    %v932 = vrot.slane %v813, %v931
    %vm933 = vcmask 982912
    %v934 = vsel %vm933, %v932, %v927
    %v935 = vadd.s32 %v832, 4294967176
    %v936 = vlaneseq
    %v937 = vshrl.u32 %v936, 7
    %v938 = vsub.s32 %v935, %v937
    %v939 = vrot.slane %v814, %v938
    %vm940 = vcmask 1048512
    %v941 = vsel %vm940, %v939, %v934
    %943 = vst [vmem:[#allocation3] sm:$0x1] %v941
    // Predicated region
    $region38: #{tpu_custom_call.1} parent=1 // pred_check
      _
    $region39: #{tpu_custom_call.1} parent=1 // pred_check_branch
      %945 = sbr.rel (0) target = $region41
    $region40: #{tpu_custom_call.1} parent=1 // pred_region
      %s947 = ssub.s32 16, 16
      %948 = vsyncadd [#allocation4], %s947
      %s950 = sshll.u32 [#allocation3], 4
      %s951 = int_to_ptr.vmem [resolvable:$true] %s950
      %953 = dma.vmem_to_hbm [thread:$0]  %s951, 16, %s9, [#allocation4]
    $region41: #{tpu_custom_call.1} parent=1 // pred_fallthru
      _
    // Predicated region
    $region42: #{tpu_custom_call.1} parent=1 // pred_check
      _
    $region43: #{tpu_custom_call.1} parent=1 // pred_check_branch
      %955 = sbr.rel (0) target = $region45
    $region44: #{tpu_custom_call.1} parent=1 // pred_region
      %956 = dma.done [#allocation4], 16
    $region45: #{tpu_custom_call.1} parent=1 // pred_fallthru
      _
    %957 = vsyncpa [#allocation4], 1

</llo_original>
